<compile_context>
chip_gen: v7x
topology: tpu7x:2x2x1
jax: 0.10.0
libtpu: 0.0.40
codegen_flags: <defaults>
</compile_context>

<pallas_src>
import jax
import jax.numpy as jnp
from jax import lax
from jax.experimental import pallas as pl
from jax.experimental.pallas import tpu as pltpu

_LANE = 128
_EPS = 1e-12


def _make_kernel(inv_temp: float, do_norm: bool):
    def kernel(x_ref, w_ref, o_ref):
        x = x_ref[...]                                     # (TB, F), input dtype
        if do_norm:
            xf = x.astype(jnp.float32)
            sq = jnp.sum(xf * xf, axis=-1, keepdims=True)  # (TB, 1), f32
            # F.normalize: x / max(||x||, eps) == x * rsqrt(max(sq, eps^2));
            # fold the 1/temp of fc(x)/temp into the same scale (rsqrt -> EUP).
            scale = lax.rsqrt(jnp.maximum(sq, _EPS * _EPS)) * inv_temp
            xn = (xf * scale).astype(x.dtype)              # MXU operands stay in input dtype
        else:
            xn = x
        # (TB, F) . (Cpad, F)^T -> (TB, Cpad): contraction on the feature axis,
        # so the (C, F) PyTorch weight never needs a wrapper-side transpose.
        out = lax.dot_general(
            xn, w_ref[...],
            dimension_numbers=(((1,), (1,)), ((), ())),
            preferred_element_type=jnp.float32)
        o_ref[...] = out.astype(o_ref.dtype)

    return kernel


def _round_up(n: int, m: int) -> int:
    return ((n + m - 1) // m) * m


def res_classifier_mme_forward(x, weight, *, temp=0.05, norm=True,
                               return_feat=False):
    """Pallas TPU implementation of ResClassifier_MME.forward.

    x      : (B, F) features
    weight : (C, F) Linear weight (PyTorch nn.Linear(F, C, bias=False) layout)
    """
    if return_feat:
        return x

    B, F = x.shape
    C = weight.shape[0]
    Cpad = _round_up(max(C, 1), _LANE)

    # One-time zero padding of the class axis -> lane-dense output stores and a
    # full 128-wide MXU N dimension. Weight stays (classes, features).
    if Cpad != C:
        w_pad = jnp.zeros((Cpad, F), weight.dtype).at[:C, :].set(weight)
    else:
        w_pad = weight

    # norm=False branch intentionally has NO /temp scale (faithful to the module).
    inv_temp = (1.0 / float(temp)) if norm else 1.0
    kernel = _make_kernel(inv_temp, norm)

    x_itemsize = jnp.dtype(x.dtype).itemsize
    out_dtype = x.dtype
    out_itemsize = jnp.dtype(out_dtype).itemsize
    w_bytes = Cpad * F * jnp.dtype(weight.dtype).itemsize

    # VMEM-aware batch tile (safe for v7x's 64 MiB VMEM as well as v5e/v6e's
    # 128 MiB): 2x double-buffered x tile + resident weight + 2x output tile
    # under ~40 MiB.
    budget = 40 * 1024 * 1024
    per_row = 2 * F * x_itemsize + 2 * Cpad * out_itemsize
    tb_cap = max(8, min(2048, (budget - w_bytes) // per_row))
    tb_cap = (tb_cap // 8) * 8

    if B <= tb_cap:
        # Small batch: single whole-array VMEM block, no grid-loop overhead.
        out_p = pl.pallas_call(
            kernel,
            out_shape=jax.ShapeDtypeStruct((B, Cpad), out_dtype),
            in_specs=[
                pl.BlockSpec(memory_space=pltpu.MemorySpace.VMEM),
                pl.BlockSpec(memory_space=pltpu.MemorySpace.VMEM),
            ],
            out_specs=pl.BlockSpec(memory_space=pltpu.MemorySpace.VMEM),
        )(x, w_pad)
        return out_p[:, :C]

    # Large batch: tile the batch dim; weight block stays resident across steps.
    num_tiles = pl.cdiv(B, tb_cap)
    TB = _round_up(pl.cdiv(B, num_tiles), 8)
    num_tiles = pl.cdiv(B, TB)
    Bp = num_tiles * TB
    x_p = jnp.pad(x, ((0, Bp - B), (0, 0))) if Bp != B else x

    vmem_needed = (2 * TB * F * x_itemsize + w_bytes
                   + 2 * TB * Cpad * out_itemsize)
    vmem_limit = int(min(48 * 1024 * 1024, vmem_needed + 4 * 1024 * 1024))

    out_p = pl.pallas_call(
        kernel,
        out_shape=jax.ShapeDtypeStruct((Bp, Cpad), out_dtype),
        grid=(num_tiles,),
        in_specs=[
            pl.BlockSpec((TB, F), lambda i: (i, 0)),
            pl.BlockSpec((Cpad, F), lambda i: (0, 0)),
        ],
        out_specs=pl.BlockSpec((TB, Cpad), lambda i: (i, 0)),
        compiler_params=pltpu.CompilerParams(
            dimension_semantics=("parallel",),
            vmem_limit_bytes=vmem_limit,
        ),
    )(x_p, w_pad)
    return out_p[:B, :C]


if __name__ == "__main__":
    # Small shapes consistent with the module: (batch, input_size) features,
    # num_classes logits. Default input_size is 2048; use a small 256 here.
    batch, input_size, num_classes = 8, 256, 12
    temp = 0.05

    key = jax.random.PRNGKey(0)
    kx, kw, kx2 = jax.random.split(key, 3)

    x = jax.random.normal(kx, (batch, input_size), dtype=jnp.float32)
    # weights_init(): normal_(0.0, 0.1), weight shape (num_classes, input_size)
    weight = 0.1 * jax.random.normal(kw, (num_classes, input_size),
                                     dtype=jnp.float32)

    # --- norm=True path (default), small-batch / gridless ---
    out = res_classifier_mme_forward(x, weight, temp=temp, norm=True)
    out = jax.block_until_ready(out)
    xn_ref = x / jnp.maximum(
        jnp.sqrt(jnp.sum(x * x, axis=1, keepdims=True)), 1e-12)
    ref = (xn_ref @ weight.T) / temp
    assert out.shape == (batch, num_classes)
    assert jnp.allclose(out, ref, atol=1e-3, rtol=1e-3)

    # --- norm=False path (plain bias-free linear, no /temp) ---
    out_nf = res_classifier_mme_forward(x, weight, temp=temp, norm=False)
    out_nf = jax.block_until_ready(out_nf)
    assert jnp.allclose(out_nf, x @ weight.T, atol=1e-3, rtol=1e-3)

    # --- batch-tiled grid path (large B, exercises padding + parallel grid) ---
    big_batch = 4212
    xb = jax.random.normal(kx2, (big_batch, input_size), dtype=jnp.float32)
    out_b = res_classifier_mme_forward(xb, weight, temp=temp, norm=True)
    out_b = jax.block_until_ready(out_b)
    xb_n = xb / jnp.maximum(
        jnp.sqrt(jnp.sum(xb * xb, axis=1, keepdims=True)), 1e-12)
    ref_b = (xb_n @ weight.T) / temp
    assert out_b.shape == (big_batch, num_classes)
    assert jnp.allclose(out_b, ref_b, atol=1e-3, rtol=1e-3)

    print("KERNEL_OK")
</pallas_src>

<mosaic_0001>
module attributes {stable_mosaic.version = 11 : i64} {
  func.func @kernel(%arg0: memref<8x256xf32, #tpu.memory_space<vmem>>, %arg1: memref<128x256xf32, #tpu.memory_space<vmem>>, %arg2: memref<8x128xf32, #tpu.memory_space<vmem>>) attributes {dimension_semantics = [], scalar_prefetch = 0 : i64, scratch_operands = 0 : i64, tpu.core_type = #tpu.core_type<tc>} {
    %c0 = arith.constant 0 : index
    %c0_0 = arith.constant 0 : index
    %0 = vector.load %arg0[%c0, %c0_0] : memref<8x256xf32, #tpu.memory_space<vmem>>, vector<8x256xf32>
    %1 = arith.mulf %0, %0 : vector<8x256xf32>
    %cst = arith.constant dense<0.000000e+00> : vector<8xf32>
    %2 = vector.multi_reduction <add>, %1, %cst [1] : vector<8x256xf32> to vector<8xf32>
    %3 = vector.shape_cast %2 : vector<8xf32> to vector<8x1xf32>
    %cst_1 = arith.constant 1.000000e-24 : f32
    %4 = vector.broadcast %cst_1 : f32 to vector<8x1xf32>
    %5 = arith.maximumf %3, %4 : vector<8x1xf32>
    %6 = math.rsqrt %5 : vector<8x1xf32>
    %cst_2 = arith.constant 2.000000e+01 : f32
    %7 = vector.broadcast %cst_2 : f32 to vector<8x1xf32>
    %8 = arith.mulf %6, %7 : vector<8x1xf32>
    %9 = vector.broadcast %8 : vector<8x1xf32> to vector<8x256xf32>
    %10 = arith.mulf %0, %9 : vector<8x256xf32>
    %c0_3 = arith.constant 0 : index
    %c0_4 = arith.constant 0 : index
    %11 = vector.load %arg1[%c0_3, %c0_4] : memref<128x256xf32, #tpu.memory_space<vmem>>, vector<128x256xf32>
    %cst_5 = arith.constant dense<0.000000e+00> : vector<8x128xf32>
    %12 = tpu.matmul %10, %11, %cst_5 {dimension_numbers = #tpu.dot_dimension_numbers<[1], [1], [0], [0], [0, 0, 1, 0], [], []>} : vector<8x256xf32>, vector<128x256xf32>, vector<8x128xf32> -> vector<8x128xf32>
    %c0_6 = arith.constant 0 : index
    %c0_7 = arith.constant 0 : index
    %13 = vector.load %arg2[%c0_6, %c0_7] : memref<8x128xf32, #tpu.memory_space<vmem>>, vector<8x128xf32>
    tpu.vector_store %arg2[%c0_6, %c0_7], %12 {strides = array<i32>} : memref<8x128xf32, #tpu.memory_space<vmem>>, vector<8x128xf32>,
    return
  }
}

</mosaic_0001>

<llo_original>
// kernel: tpu_custom_call.1
$region0: #{tpu_custom_call.1}
  #allocation0 [shape = 'u32[]', space=smem, size = 0x4, offset = 0x4, fixed_abs, tag = 'smem constant byte address 0x4 - core index']
  #allocation1 [shape = 'u32[144,128]{1,0:T(1,128)}', space=vmem, size = 0x12000, scoped, tag = 'internal scratch']
  %s0 = inlined_call_operand.hbm [shape: f32[8,256], index: 0, kind: input, shape index: {}]
  %s1 = inlined_call_operand.hbm [shape: f32[128,256], index: 1, kind: input, shape index: {}]
  %s2 = inlined_call_operand.hbm [shape: f32[8,128], index: 2, kind: output, shape index: {}]
  %s3 = sld [smem:[#allocation0]]
  $region26: #{tpu_custom_call.1} parent=0
    _
  %s5 = ssub.s32 1, %s3
  %s6 = scalar_select 0, %s5, %s3
  $region1: #{tpu_custom_call.1} parent=0
    #allocation2 [shape = 'u8[8192]{0}', space=vmem, size = 0x2000, scoped, tag = 'input window, operand 0, single buffered']
    #allocation3 [shape = 's32[1]{0}', space=sflag, size = 0x4, scoped, tag = 'scoped memory for tpu_custom_call.1']
    #allocation4 [shape = 's32[1]{0}', space=sflag, size = 0x4, scoped, tag = 'scoped memory for tpu_custom_call.1']
    #allocation5 [shape = 'u8[131072]{0}', space=vmem, size = 0x20000, scoped, tag = 'input window, operand 1, single buffered']
    #allocation6 [shape = 's32[1]{0}', space=sflag, size = 0x4, scoped, tag = 'scoped memory for tpu_custom_call.1']
    #allocation7 [shape = 'u8[4096]{0}', space=vmem, size = 0x1000, scoped, tag = 'output window, operand 0, single buffered']
    %7 = vsyncpa [#allocation3], 0
    %8 = vsyncpa [#allocation6], 0
    %9 = vsyncpa [#allocation4], 0
    // Predicated region
    $region2: #{tpu_custom_call.1} parent=1 // pred_check
      _
    $region3: #{tpu_custom_call.1} parent=1 // pred_check_branch
      %11 = sbr.rel (0) target = $region5
    $region4: #{tpu_custom_call.1} parent=1 // pred_region
      %s13 = ssub.s32 256, 256
      %14 = vsyncadd [#allocation3], %s13
      %s16 = sshll.u32 [#allocation2], 4
      %s17 = int_to_ptr.vmem [resolvable:$true] %s16
      %19 = dma.hbm_to_vmem [thread:$0]  %s0, 256, %s17, [#allocation3]
    $region5: #{tpu_custom_call.1} parent=1 // pred_fallthru
      _
    // Predicated region
    $region6: #{tpu_custom_call.1} parent=1 // pred_check
      _
    $region7: #{tpu_custom_call.1} parent=1 // pred_check_branch
      %21 = sbr.rel (0) target = $region9
    $region8: #{tpu_custom_call.1} parent=1 // pred_region
      %s23 = ssub.s32 4096, 4096
      %24 = vsyncadd [#allocation6], %s23
      %s25 = sshll.u32 [#allocation5], 4
      %s26 = int_to_ptr.vmem [resolvable:$true] %s25
      %31 = dma.hbm_to_vmem [thread:$0]  %s1, 4096, %s26, [#allocation6], 256, 256, 16
    $region9: #{tpu_custom_call.1} parent=1 // pred_fallthru
      _
    // Predicated region
    $region10: #{tpu_custom_call.1} parent=1 // pred_check
      _
    $region11: #{tpu_custom_call.1} parent=1 // pred_check_branch
      %33 = sbr.rel (0) target = $region13
    $region12: #{tpu_custom_call.1} parent=1 // pred_region
      %34 = dma.done [#allocation3], 256
    $region13: #{tpu_custom_call.1} parent=1 // pred_fallthru
      _
    // Predicated region
    $region14: #{tpu_custom_call.1} parent=1 // pred_check
      _
    $region15: #{tpu_custom_call.1} parent=1 // pred_check_branch
      %36 = sbr.rel (0) target = $region17
    $region16: #{tpu_custom_call.1} parent=1 // pred_region
      %37 = dma.done [#allocation6], 4096
    $region17: #{tpu_custom_call.1} parent=1 // pred_fallthru
      _
    %v38 = vld [vmem:[#allocation2] sm:$0xff]
    %v39 = vld [vmem:[#allocation2 + $0x8] sm:$0xff]
    %v40 = vmul.f32 %v38, %v38
    %v41 = vmul.f32 %v39, %v39
    %v42 = vadd.f32 %v40, %v41
    %43 = vadd.xlane.f32.xlu0 %v42
    %v44 = vpop.xlane.xlu0 %43
    %v45 = vmax.f32 %v44, 1e-24
    %v46 = vrsqrt.pop %v45
    %v47 = vmul.f32 %v46, 20.0
    %v48 = vmul.f32 %v38, %v47
    %v49 = vmul.f32 %v39, %v47
    %v50 = vld [vmem:[#allocation5] sm:$0xff]
    %v51 = vld [vmem:[#allocation5 + $0x8] sm:$0xff]
    %v52 = vld [vmem:[#allocation5 + $0x10] sm:$0xff]
    %v53 = vld [vmem:[#allocation5 + $0x18] sm:$0xff]
    %v54 = vld [vmem:[#allocation5 + $0x20] sm:$0xff]
    %v55 = vld [vmem:[#allocation5 + $0x28] sm:$0xff]
    %v56 = vld [vmem:[#allocation5 + $0x30] sm:$0xff]
    %v57 = vld [vmem:[#allocation5 + $0x38] sm:$0xff]
    %v58 = vld [vmem:[#allocation5 + $0x40] sm:$0xff]
    %v59 = vld [vmem:[#allocation5 + $0x48] sm:$0xff]
    %v60 = vld [vmem:[#allocation5 + $0x50] sm:$0xff]
    %v61 = vld [vmem:[#allocation5 + $0x58] sm:$0xff]
    %v62 = vld [vmem:[#allocation5 + $0x60] sm:$0xff]
    %v63 = vld [vmem:[#allocation5 + $0x68] sm:$0xff]
    %v64 = vld [vmem:[#allocation5 + $0x70] sm:$0xff]
    %v65 = vld [vmem:[#allocation5 + $0x78] sm:$0xff]
    %v66 = vld [vmem:[#allocation5 + $0x80] sm:$0xff]
    %v67 = vld [vmem:[#allocation5 + $0x88] sm:$0xff]
    %v68 = vld [vmem:[#allocation5 + $0x90] sm:$0xff]
    %v69 = vld [vmem:[#allocation5 + $0x98] sm:$0xff]
    %v70 = vld [vmem:[#allocation5 + $0xa0] sm:$0xff]
    %v71 = vld [vmem:[#allocation5 + $0xa8] sm:$0xff]
    %v72 = vld [vmem:[#allocation5 + $0xb0] sm:$0xff]
    %v73 = vld [vmem:[#allocation5 + $0xb8] sm:$0xff]
    %v74 = vld [vmem:[#allocation5 + $0xc0] sm:$0xff]
    %v75 = vld [vmem:[#allocation5 + $0xc8] sm:$0xff]
    %v76 = vld [vmem:[#allocation5 + $0xd0] sm:$0xff]
    %v77 = vld [vmem:[#allocation5 + $0xd8] sm:$0xff]
    %v78 = vld [vmem:[#allocation5 + $0xe0] sm:$0xff]
    %v79 = vld [vmem:[#allocation5 + $0xe8] sm:$0xff]
    %v80 = vld [vmem:[#allocation5 + $0xf0] sm:$0xff]
    %v81 = vld [vmem:[#allocation5 + $0xf8] sm:$0xff]
    %82 = vmatprep.subr.mxu0 %v51
    %83 = vmatpush1.xpose.msra.mxu0 %v50
    %84 = vmatprep.subr.mxu0 %v53
    %85 = vmatpush1.xpose.msra.mxu0 %v52
    %86 = vmatprep.subr.mxu0 %v55
    %87 = vmatpush1.xpose.msra.mxu0 %v54
    %88 = vmatprep.subr.mxu0 %v57
    %89 = vmatpush1.xpose.msra.mxu0 %v56
    %90 = vmatprep.subr.mxu0 %v59
    %91 = vmatpush1.xpose.msra.mxu0 %v58
    %92 = vmatprep.subr.mxu0 %v61
    %93 = vmatpush1.xpose.msra.mxu0 %v60
    %94 = vmatprep.subr.mxu0 %v63
    %95 = vmatpush1.xpose.msra.mxu0 %v62
    %96 = vmatprep.subr.mxu0 %v65
    %97 = vmatpush1.xpose.msra.mxu0 %v64
    %98 = vmatprep.subr.mxu0 %v67
    %99 = vmatpush1.xpose.msra.mxu0 %v66
    %100 = vmatprep.subr.mxu0 %v69
    %101 = vmatpush1.xpose.msra.mxu0 %v68
    %102 = vmatprep.subr.mxu0 %v71
    %103 = vmatpush1.xpose.msra.mxu0 %v70
    %104 = vmatprep.subr.mxu0 %v73
    %105 = vmatpush1.xpose.msra.mxu0 %v72
    %106 = vmatprep.subr.mxu0 %v75
    %107 = vmatpush1.xpose.msra.mxu0 %v74
    %108 = vmatprep.subr.mxu0 %v77
    %109 = vmatpush1.xpose.msra.mxu0 %v76
    %110 = vmatprep.subr.mxu0 %v79
    %111 = vmatpush1.xpose.msra.mxu0 %v78
    %112 = vmatprep.subr.mxu0 %v81
    %113 = vmatpush1.xpose.msra.mxu0 %v80
    %114 = vmatprep.subr.mxu0 0.0
    %115 = vmatpush1.xpose.msra.mxu0 0.0
    %116 = vmatprep.subr.mxu0 0.0
    %117 = vmatpush1.xpose.msra.mxu0 0.0
    %118 = vmatprep.subr.mxu0 0.0
    %119 = vmatpush1.xpose.msra.mxu0 0.0
    %120 = vmatprep.subr.mxu0 0.0
    %121 = vmatpush1.xpose.msra.mxu0 0.0
    %122 = vmatprep.subr.mxu0 0.0
    %123 = vmatpush1.xpose.msra.mxu0 0.0
    %124 = vmatprep.subr.mxu0 0.0
    %125 = vmatpush1.xpose.msra.mxu0 0.0
    %126 = vmatprep.subr.mxu0 0.0
    %127 = vmatpush1.xpose.msra.mxu0 0.0
    %128 = vmatprep.subr.mxu0 0.0
    %129 = vmatpush1.xpose.msra.mxu0 0.0
    %130 = vmatprep.subr.mxu0 0.0
    %131 = vmatpush1.xpose.msra.mxu0 0.0
    %132 = vmatprep.subr.mxu0 0.0
    %133 = vmatpush1.xpose.msra.mxu0 0.0
    %134 = vmatprep.subr.mxu0 0.0
    %135 = vmatpush1.xpose.msra.mxu0 0.0
    %136 = vmatprep.subr.mxu0 0.0
    %137 = vmatpush1.xpose.msra.mxu0 0.0
    %138 = vmatprep.subr.mxu0 0.0
    %139 = vmatpush1.xpose.msra.mxu0 0.0
    %140 = vmatprep.subr.mxu0 0.0
    %141 = vmatpush1.xpose.msra.mxu0 0.0
    %142 = vmatprep.subr.mxu0 0.0
    %143 = vmatpush1.xpose.msra.mxu0 0.0
    %144 = vmatprep.subr.mxu0 0.0
    %145 = vmatpush1.xpose.msra.mxu0 0.0
    %146 = vmatprep.mubr.f32.mxu0 %v49
    %147 = vmatmul.mubr.f32.gmra.mrb[0].mxu0 %v48
    %v148 = vpop.f32.mrb[0].mxu0
    %v149 = vadd.f32 0.0, %v148
    %v150 = vpop.f32.mrb[0].mxu0
    %151 = vdwg.mxu0
    %152 = vst [vmem:[#allocation7] sm:$0xff] %v149
    // Predicated region
    $region18: #{tpu_custom_call.1} parent=1 // pred_check
      _
    $region19: #{tpu_custom_call.1} parent=1 // pred_check_branch
      %154 = sbr.rel (0) target = $region21
    $region20: #{tpu_custom_call.1} parent=1 // pred_region
      %s156 = ssub.s32 128, 128
      %157 = vsyncadd [#allocation4], %s156
      %s159 = sshll.u32 [#allocation7], 4
      %s160 = int_to_ptr.vmem [resolvable:$true] %s159
      %162 = dma.vmem_to_hbm [thread:$0]  %s160, 128, %s2, [#allocation4]
    $region21: #{tpu_custom_call.1} parent=1 // pred_fallthru
      _
    // Predicated region
    $region22: #{tpu_custom_call.1} parent=1 // pred_check
      _
    $region23: #{tpu_custom_call.1} parent=1 // pred_check_branch
      %164 = sbr.rel (0) target = $region25
    $region24: #{tpu_custom_call.1} parent=1 // pred_region
      %165 = dma.done [#allocation4], 128
    $region25: #{tpu_custom_call.1} parent=1 // pred_fallthru
      _
    %166 = vsyncpa [#allocation3], 1
    %167 = vsyncpa [#allocation6], 1
    %168 = vsyncpa [#allocation4], 1

</llo_original>
